<compile_context>
chip_gen: v5e
topology: v5e:2x2
jax: 0.10.0
libtpu: 0.0.40
codegen_flags: <defaults>
</compile_context>

<pallas_src>
import math
from typing import Optional

import jax
import jax.numpy as jnp
from jax.experimental import pallas as pl
from jax.experimental.pallas import tpu as pltpu


def make_positional_encoding_buffer(d_model: int, max_len: int = 32) -> jnp.ndarray:
    """Deterministic sinusoidal pe buffer, shape (max_len, d_model), float32.

    Mirrors the PyTorch __init__ exactly (interleaved sin/cos)."""
    position = jnp.arange(max_len, dtype=jnp.float32)[:, None]          # (max_len, 1)
    div_term = jnp.exp(
        jnp.arange(0, d_model, 2, dtype=jnp.float32) * (-math.log(10000.0) / d_model)
    )                                                                    # (d_model//2,)
    angles = position * div_term                                         # (max_len, d_model//2)
    pe = jnp.zeros((max_len, d_model), dtype=jnp.float32)
    pe = pe.at[:, 0::2].set(jnp.sin(angles))
    pe = pe.at[:, 1::2].set(jnp.cos(angles))
    return pe


def _pe_add_kernel(x_ref, pe_ref, o_ref):
    # x_ref:  (block_rows, T*D)  current tile of the flattened input
    # pe_ref: (1, T*D)           resident pe row (constant index_map -> DMA'd once)
    # o_ref:  (block_rows, T*D)  output tile
    # The sublane broadcast of pe is a cheap VPU op, fully hidden under the
    # HBM DMA in this mem-bound kernel.
    o_ref[...] = (x_ref[...] + pe_ref[...]).astype(o_ref.dtype)


# ---------------------------------------------------------------------------
# Per-generation block-size policy
# ---------------------------------------------------------------------------

def _tpu_generation() -> str:
    try:
        kind = jax.devices()[0].device_kind.lower()
    except Exception:
        return "unknown"
    if "v5 lite" in kind or "v5e" in kind or "v5lite" in kind:
        return "v5e"
    if "v6" in kind or "trillium" in kind:
        return "v6e"
    if "v7" in kind:
        return "v7x"
    return "unknown"


# gen -> (target bytes for the larger of x/out block, min grid steps, vmem cap)
_GEN_BLOCK_CONFIG = {
    "v5e":     (2 << 20, 1, 100 << 20),  # 16 MiB default scoped VMEM -> 2 MiB blocks
    "v6e":     (4 << 20, 1, 100 << 20),  # 32 MiB default scoped / 128 MiB physical
    "v7x":     (4 << 20, 2, 56 << 20),   # 64 MiB physical; >=2 steps -> both TCs busy
    "unknown": (2 << 20, 1, 56 << 20),   # conservative
}


def _row_quantum(*itemsizes: int) -> int:
    # Sub-32-bit dtypes pack 2/4 rows per sublane; keep blocks a multiple of the
    # packing factor so output stores stay unmasked / lane-dense.
    return max(32 // min(itemsizes), 8)


def _pick_block_rows(num_rows: int, row_bytes: int, quantum: int,
                     target_block_bytes: int, min_grid_steps: int) -> int:
    """Rows per grid step: ~target_block_bytes per (larger of x/out) block,
    multiple of `quantum` unless the block covers the whole array, and capped
    so the grid has at least `min_grid_steps` steps (v7x megacore)."""
    if num_rows <= quantum:
        return num_rows
    rows = (target_block_bytes // max(row_bytes, 1)) // quantum * quantum
    rows = max(quantum, rows)
    if min_grid_steps > 1:
        cap = -(-num_rows // min_grid_steps)          # ceil(num_rows / steps)
        cap = -(-cap // quantum) * quantum            # round up to quantum
        rows = min(rows, cap)
    if rows >= num_rows:
        return num_rows
    return rows


# ---------------------------------------------------------------------------
# Forward
# ---------------------------------------------------------------------------

def positional_encoding_forward(
    x: jnp.ndarray,
    pe_buffer: jnp.ndarray,
    roll: Optional[int] = None,
    full_video_length: Optional[int] = None,
    *,
    block_rows: Optional[int] = None,
    match_x_dtype: bool = False,
    donate_x: bool = False,
) -> jnp.ndarray:
    """Forward pass of PositionalEncoding.

    x:         (B, T, D)
    pe_buffer: (max_len, D)  (float32, as registered in the torch module)
    roll / full_video_length must be static Python ints (constant-folded glue).
    match_x_dtype: opt-in bf16 fast path (output dtype == x.dtype instead of
                   strict PyTorch promotion).
    donate_x:  alias x -> out when dtypes match (footprint win, opt-in).
    """
    B, T, D = x.shape

    # --- glue: select (and optionally roll) the pe slice, shape (T, D) ---
    if roll is None:
        pe = pe_buffer[:T]
    else:
        assert full_video_length is not None, (
            "full_video_length must be passed when roll is not None."
        )
        pe = jnp.roll(pe_buffer[:full_video_length], shift=roll, axis=0)[:T]

    if match_x_dtype:
        # Opt-in: deviates from strict torch promotion (bf16 + f32 -> f32) to
        # keep the output in x.dtype and cut HBM write traffic ~2x.
        pe = pe.astype(x.dtype)
    out_dtype = jnp.result_type(x.dtype, pe.dtype)

    # --- flatten so the last dim is the full, lane-dense T*D row ---
    TD = T * D
    x2 = x.reshape(B, TD)
    pe_row = pe.astype(out_dtype).reshape(1, TD)

    x_itemsize = jnp.dtype(x.dtype).itemsize
    out_itemsize = jnp.dtype(out_dtype).itemsize
    pe_itemsize = jnp.dtype(pe_row.dtype).itemsize
    quantum = _row_quantum(x_itemsize, out_itemsize)

    gen = _tpu_generation()
    target_block_bytes, min_grid_steps, vmem_cap = _GEN_BLOCK_CONFIG[gen]

    row_bytes = TD * max(x_itemsize, out_itemsize)
    if block_rows is None:
        block_rows = _pick_block_rows(B, row_bytes, quantum,
                                      target_block_bytes, min_grid_steps)
    else:
        block_rows = min(block_rows, B)
        if block_rows < B:
            block_rows = max(quantum, (block_rows // quantum) * quantum)
            block_rows = min(block_rows, B)

    grid = (pl.cdiv(B, block_rows),)

    # VMEM budget from the actual chosen block sizes (double-buffered x + out,
    # pe row pads to 8 sublanes) + headroom, floor 16 MiB, generation cap.
    x_block_bytes = block_rows * TD * x_itemsize
    out_block_bytes = block_rows * TD * out_itemsize
    pe_block_bytes = 8 * TD * pe_itemsize
    vmem_needed = 2 * (x_block_bytes + out_block_bytes + pe_block_bytes) + (4 << 20)
    vmem_limit = int(min(max(vmem_needed, 16 << 20), vmem_cap))

    cost = pl.CostEstimate(
        flops=B * TD,
        transcendentals=0,
        bytes_accessed=B * TD * (x_itemsize + out_itemsize) + TD * pe_itemsize,
    )

    io_aliases = {}
    if donate_x and out_dtype == x.dtype:
        io_aliases = {0: 0}   # x2 -> out2 (same shape & dtype)

    out2 = pl.pallas_call(
        _pe_add_kernel,
        out_shape=jax.ShapeDtypeStruct((B, TD), out_dtype),
        grid_spec=pltpu.PrefetchScalarGridSpec(
            num_scalar_prefetch=0,
            grid=grid,
            in_specs=[
                pl.BlockSpec((block_rows, TD), lambda i: (i, 0)),
                pl.BlockSpec((1, TD), lambda i: (0, 0)),   # resident pe row
            ],
            out_specs=pl.BlockSpec((block_rows, TD), lambda i: (i, 0)),
        ),
        compiler_params=pltpu.CompilerParams(
            dimension_semantics=("parallel",),
            vmem_limit_bytes=vmem_limit,
        ),
        cost_estimate=cost,
        input_output_aliases=io_aliases,
    )(x2, pe_row)

    # dropout(p=0.0) == identity
    return out2.reshape(B, T, D)


def _reference_forward(x, pe_buffer, roll=None, full_video_length=None):
    T = x.shape[1]
    if roll is None:
        pe = pe_buffer[:T]
    else:
        pe = jnp.roll(pe_buffer[:full_video_length], shift=roll, axis=0)[:T]
    return x + pe[None]   # jnp promotion matches torch promotion here


if __name__ == "__main__":
    key = jax.random.PRNGKey(0)

    # small shapes consistent with the module: batch=2, seq=8, hidden=32
    B, T, D = 2, 8, 32
    max_len = 32

    x = jax.random.normal(key, (B, T, D), dtype=jnp.float32)
    pe_buf = make_positional_encoding_buffer(D, max_len=max_len)

    # Case 1: no roll
    y0 = positional_encoding_forward(x, pe_buf)
    jax.block_until_ready(y0)
    ref0 = _reference_forward(x, pe_buf)
    assert y0.dtype == ref0.dtype
    assert jnp.allclose(y0, ref0, atol=1e-6), "mismatch (no roll)"

    # Case 2: roll semantics (full_video_length=16, roll=2)
    y1 = positional_encoding_forward(x, pe_buf, roll=2, full_video_length=16)
    jax.block_until_ready(y1)
    ref1 = _reference_forward(x, pe_buf, roll=2, full_video_length=16)
    assert jnp.allclose(y1, ref1, atol=1e-6), "mismatch (roll)"

    # Case 3: multi-step grid with a partial last block (exercises tiling path)
    k1, k2 = jax.random.split(jax.random.PRNGKey(1))
    B2 = 40
    xb = jax.random.normal(k1, (B2, T, D), dtype=jnp.float32)
    y2 = positional_encoding_forward(xb, pe_buf, block_rows=16)
    jax.block_until_ready(y2)
    ref2 = _reference_forward(xb, pe_buf)
    assert jnp.allclose(y2, ref2, atol=1e-6), "mismatch (tiled batch)"

    # Case 4: bf16 fast path (match_x_dtype) + input/output aliasing
    xc = jax.random.normal(k2, (16, T, D), dtype=jnp.bfloat16)
    ref3 = xc + pe_buf[:T].astype(jnp.bfloat16)[None]   # computed before donation
    y3 = positional_encoding_forward(xc, pe_buf, match_x_dtype=True, donate_x=True)
    jax.block_until_ready(y3)
    assert y3.dtype == jnp.bfloat16
    assert jnp.allclose(y3.astype(jnp.float32), ref3.astype(jnp.float32),
                        atol=2e-2), "mismatch (bf16 fast path)"

    print("KERNEL_OK")
</pallas_src>

<mosaic_0001>
module attributes {stable_mosaic.version = 11 : i64} {
  func.func @_pe_add_kernel(%arg0: i32, %arg1: memref<2x256xf32, #tpu.memory_space<vmem>>, %arg2: memref<1x256xf32, #tpu.memory_space<vmem>>, %arg3: memref<2x256xf32, #tpu.memory_space<vmem>>) attributes {dimension_semantics = [#tpu.dimension_semantics<parallel>], iteration_bounds = array<i64: 1>, scalar_prefetch = 0 : i64, scratch_operands = 0 : i64, tpu.core_type = #tpu.core_type<tc>, window_params = [{transform_indices = @transform_0, window_bounds = array<i64: 2, 256>}, {pipeline_mode = #tpu.pipeline_mode<synchronous>, transform_indices = @transform_1, window_bounds = array<i64: 1, 256>}, {transform_indices = @transform_2, window_bounds = array<i64: 2, 256>}]} {
    %c0 = arith.constant 0 : index
    %c0_0 = arith.constant 0 : index
    %0 = vector.load %arg1[%c0, %c0_0] : memref<2x256xf32, #tpu.memory_space<vmem>>, vector<2x256xf32>
    %c0_1 = arith.constant 0 : index
    %c0_2 = arith.constant 0 : index
    %1 = vector.load %arg2[%c0_1, %c0_2] : memref<1x256xf32, #tpu.memory_space<vmem>>, vector<1x256xf32>
    %2 = vector.broadcast %1 : vector<1x256xf32> to vector<2x256xf32>
    %3 = arith.addf %0, %2 : vector<2x256xf32>
    %c0_3 = arith.constant 0 : index
    %c0_4 = arith.constant 0 : index
    %4 = vector.load %arg3[%c0_3, %c0_4] : memref<2x256xf32, #tpu.memory_space<vmem>>, vector<2x256xf32>
    tpu.vector_store %arg3[%c0_3, %c0_4], %3 {strides = array<i32>} : memref<2x256xf32, #tpu.memory_space<vmem>>, vector<2x256xf32>,
    return
  }
  func.func @transform_0(%arg0: i32) -> (i32, i32) {
    %c0_i32 = arith.constant 0 : i32
    %c0_i32_0 = arith.constant 0 : i32
    return %arg0, %c0_i32 : i32, i32
  }
  func.func @transform_1(%arg0: i32) -> (i32, i32) {
    %c0_i32 = arith.constant 0 : i32
    %c0_i32_0 = arith.constant 0 : i32
    %c0_i32_1 = arith.constant 0 : i32
    return %c0_i32, %c0_i32_0 : i32, i32
  }
  func.func @transform_2(%arg0: i32) -> (i32, i32) {
    %c0_i32 = arith.constant 0 : i32
    %c0_i32_0 = arith.constant 0 : i32
    return %arg0, %c0_i32 : i32, i32
  }
}

</mosaic_0001>

<llo_original>
// kernel: tpu_custom_call.1
$region0: #{tpu_custom_call.1}
  #allocation0 [shape = 'u32[]', space=smem, size = 0x4, offset = 0x4, fixed_abs, tag = 'smem constant byte address 0x4 - core index']
  #allocation1 [shape = 'u32[72,128]{1,0:T(1,128)}', space=vmem, size = 0x9000, scoped, tag = 'internal scratch']
  %s0 = inlined_call_operand.hbm [shape: f32[2,256], index: 0, kind: input, shape index: {}]
  %s1 = inlined_call_operand.hbm [shape: f32[1,256], index: 1, kind: input, shape index: {}]
  %s2 = inlined_call_operand.hbm [shape: f32[2,256], index: 2, kind: output, shape index: {}]
  %s3 = sld [smem:[#allocation0]]
  $region26: #{tpu_custom_call.1} parent=0
    _
  %s5 = ssub.s32 1, %s3
  %s6 = scalar_select 0, %s5, %s3
  $region1: #{tpu_custom_call.1} parent=0
    #allocation2 [shape = 'u8[2048]{0}', space=vmem, size = 0x800, scoped, tag = 'input window, operand 0, single buffered']
    #allocation3 [shape = 's32[1]{0}', space=sflag, size = 0x4, scoped, tag = 'scoped memory for tpu_custom_call.1']
    #allocation4 [shape = 's32[1]{0}', space=sflag, size = 0x4, scoped, tag = 'scoped memory for tpu_custom_call.1']
    #allocation5 [shape = 'u8[1024]{0}', space=vmem, size = 0x400, scoped, tag = 'input window, operand 1, single buffered']
    #allocation6 [shape = 's32[1]{0}', space=sflag, size = 0x4, scoped, tag = 'scoped memory for tpu_custom_call.1']
    #allocation7 [shape = 'u8[2048]{0}', space=vmem, size = 0x800, scoped, tag = 'output window, operand 0, single buffered']
    %7 = vsyncpa [#allocation3], 0
    %8 = vsyncpa [#allocation6], 0
    %9 = vsyncpa [#allocation4], 0
    // Predicated region
    $region2: #{tpu_custom_call.1} parent=1 // pred_check
      _
    $region3: #{tpu_custom_call.1} parent=1 // pred_check_branch
      %11 = sbr.rel (0) target = $region5
    $region4: #{tpu_custom_call.1} parent=1 // pred_region
      %13 = vsyncadd [#allocation3], 0
      %s15 = sshll.u32 %s0, 4
      %s16 = int_to_ptr.hbm [resolvable:$true] %s15
      %s17 = sshll.u32 [#allocation2], 4
      %s18 = int_to_ptr.vmem [resolvable:$true] %s17
      %20 = dma.hbm_to_vmem [thread:$0]  %s16, 64, %s18, [#allocation3]
    $region5: #{tpu_custom_call.1} parent=1 // pred_fallthru
      _
    // Predicated region
    $region6: #{tpu_custom_call.1} parent=1 // pred_check
      _
    $region7: #{tpu_custom_call.1} parent=1 // pred_check_branch
      %22 = sbr.rel (0) target = $region9
    $region8: #{tpu_custom_call.1} parent=1 // pred_region
      %24 = vsyncadd [#allocation6], 0
      %s26 = sshll.u32 %s1, 4
      %s27 = int_to_ptr.hbm [resolvable:$true] %s26
      %s28 = sshll.u32 [#allocation5], 4
      %s29 = int_to_ptr.vmem [resolvable:$true] %s28
      %31 = dma.hbm_to_vmem [thread:$0]  %s27, 32, %s29, [#allocation6]
    $region9: #{tpu_custom_call.1} parent=1 // pred_fallthru
      _
    // Predicated region
    $region10: #{tpu_custom_call.1} parent=1 // pred_check
      _
    $region11: #{tpu_custom_call.1} parent=1 // pred_check_branch
      %33 = sbr.rel (0) target = $region13
    $region12: #{tpu_custom_call.1} parent=1 // pred_region
      %35 = dma.done [#allocation3], 64
    $region13: #{tpu_custom_call.1} parent=1 // pred_fallthru
      _
    // Predicated region
    $region14: #{tpu_custom_call.1} parent=1 // pred_check
      _
    $region15: #{tpu_custom_call.1} parent=1 // pred_check_branch
      %37 = sbr.rel (0) target = $region17
    $region16: #{tpu_custom_call.1} parent=1 // pred_region
      %39 = dma.done [#allocation6], 32
    $region17: #{tpu_custom_call.1} parent=1 // pred_fallthru
      _
    %v40 = vld [vmem:[#allocation2] sm:$0xf]
    %v41 = vld [vmem:[#allocation5] sm:$0x3]
    %v43 = vperm.slane %v41, 0
    %v44 = vperm.slane %v41, 1
    %v45 = vrot.slane %v44, 6
    %vm46 = vcmask 1041408
    %v47 = vsel %vm46, %v43, %v45
    %v49 = vadd.f32 %v40, %v47
    %50 = vst [vmem:[#allocation7] sm:$0xf] %v49
    // Predicated region
    $region18: #{tpu_custom_call.1} parent=1 // pred_check
      _
    $region19: #{tpu_custom_call.1} parent=1 // pred_check_branch
      %52 = sbr.rel (0) target = $region21
    $region20: #{tpu_custom_call.1} parent=1 // pred_region
      %54 = vsyncadd [#allocation4], 0
      %s56 = sshll.u32 [#allocation7], 4
      %s57 = int_to_ptr.vmem [resolvable:$true] %s56
      %s58 = sshll.u32 %s2, 4
      %s59 = int_to_ptr.hbm [resolvable:$true] %s58
      %61 = dma.vmem_to_hbm [thread:$0]  %s57, 64, %s59, [#allocation4]
    $region21: #{tpu_custom_call.1} parent=1 // pred_fallthru
      _
    // Predicated region
    $region22: #{tpu_custom_call.1} parent=1 // pred_check
      _
    $region23: #{tpu_custom_call.1} parent=1 // pred_check_branch
      %63 = sbr.rel (0) target = $region25
    $region24: #{tpu_custom_call.1} parent=1 // pred_region
      %65 = dma.done [#allocation4], 64
    $region25: #{tpu_custom_call.1} parent=1 // pred_fallthru
      _
    %66 = vsyncpa [#allocation3], 1
    %67 = vsyncpa [#allocation6], 1
    %68 = vsyncpa [#allocation4], 1

</llo_original>
